<compile_context>
chip_gen: v5e
topology: v5e:2x2
jax: 0.10.0
libtpu: 0.0.40
codegen_flags: <defaults>
</compile_context>

<pallas_src>
import functools

import jax
import jax.numpy as jnp
from jax.experimental import pallas as pl
from jax.experimental.pallas import tpu as pltpu


# ---------------------------------------------------------------------------
# Fused kernel: per batch element, everything in one VMEM-resident pass.
#   x_ref   : (C, HW)       activation slab (batch dim squeezed)
#   w1_ref  : (C, hid)      fc1 weight
#   b1_ref  : (1, hid)      fc1 bias
#   w2r_ref : (4C, hid)     fc2 weight, columns regrouped: row j*C + c holds
#                           w2[:, 4c + j]  (j = a1, a2, c1, c2)
#   b2r_ref : (4C, 1)       fc2 bias, same regrouping
#   o_ref   : (C, HW)       output slab
# ---------------------------------------------------------------------------
def _fused_kernel(x_ref, w1_ref, b1_ref, w2r_ref, b2r_ref, o_ref, *,
                  hw_total, compute_dtype):
    C = x_ref.shape[0]
    x = x_ref[...]                                            # (C, HW), x dtype
    xf = x.astype(jnp.float32)

    # ---- spatial mean per channel (f32 accumulation) --------------------
    theta = jnp.sum(xf, axis=-1, keepdims=True) * (1.0 / hw_total)   # (C, 1)

    # ---- fc1 + ReLU as a VPU mat-vec (no MXU / no relayout) --------------
    h = jnp.sum(theta * w1_ref[...], axis=0, keepdims=True) + b1_ref[...]  # (1, hid)
    h = jnp.maximum(h, 0.0)

    # ---- fc2 (regrouped) + 2*sigmoid - 1 ---------------------------------
    z = jnp.sum(h * w2r_ref[...], axis=-1, keepdims=True) + b2r_ref[...]   # (4C, 1)
    t = 2.0 / (1.0 + jnp.exp(-z)) - 1.0                                    # (4C, 1)

    # coefficient families (C on sublanes, broadcast along lanes against x)
    a1 = (t[0:C] + 1.0).astype(compute_dtype)          # lambda 1.0, init 1.0
    a2 = t[C:2 * C].astype(compute_dtype)              # lambda 1.0, init 0.0
    c1 = (t[2 * C:3 * C] * 0.5).astype(compute_dtype)  # lambda 0.5, init 0.0
    c2 = (t[3 * C:4 * C] * 0.5).astype(compute_dtype)  # lambda 0.5, init 0.0

    xc = x.astype(compute_dtype)
    o_ref[...] = jnp.maximum(xc * a1 + c1, xc * a2 + c2).astype(o_ref.dtype)


# ---------------------------------------------------------------------------
# Two-pass fallback, phase 1: theta[b, c] = mean_hw x[b, c, :]
# Accumulates directly into the resident output block (no scratch); the
# HW-tail mask only runs on the last HW tile.
# ---------------------------------------------------------------------------
def _theta_kernel(x_ref, theta_ref, *, hw_total, thw):
    hi = pl.program_id(2)
    last = pl.num_programs(2) - 1

    @pl.when(hi == 0)
    def _init():
        theta_ref[...] = jnp.zeros_like(theta_ref)

    x = x_ref[...].astype(jnp.float32)                        # (1, tc, thw)

    if hw_total % thw != 0:
        @pl.when(hi == last)
        def _tail():
            lane = jax.lax.broadcasted_iota(jnp.int32, x.shape, 2)
            xm = jnp.where(hi * thw + lane < hw_total, x, 0.0)
            theta_ref[...] += jnp.sum(xm, axis=-1, keepdims=True)

        @pl.when(hi < last)
        def _full():
            theta_ref[...] += jnp.sum(x, axis=-1, keepdims=True)
    else:
        theta_ref[...] += jnp.sum(x, axis=-1, keepdims=True)

    @pl.when(hi == last)
    def _finalize():
        theta_ref[...] = theta_ref[...] * (1.0 / hw_total)


# ---------------------------------------------------------------------------
# Two-pass fallback, phase 3: out = max(x*a1 + c1, x*a2 + c2)
# Partial boundary tiles: padded lanes may compute garbage but are never
# written back (Pallas crops the writeback) — correct by construction.
# ---------------------------------------------------------------------------
def _apply_kernel(x_ref, coef_ref, o_ref, *, compute_dtype):
    xc = x_ref[...].astype(compute_dtype)                     # (1, tc, thw)
    coef = coef_ref[...].astype(compute_dtype)                # (1, tc, 4)
    a1 = coef[:, :, 0:1]
    a2 = coef[:, :, 1:2]
    c1 = coef[:, :, 2:3]
    c2 = coef[:, :, 3:4]
    o_ref[...] = jnp.maximum(xc * a1 + c1, xc * a2 + c2).astype(o_ref.dtype)


def _compute_dtype_for(x_dtype):
    """bf16 affine-max on v6e/v7x (native bf16 VPU); widen to f32 elsewhere."""
    if x_dtype == jnp.bfloat16:
        try:
            kind = jax.devices()[0].device_kind.lower()
        except Exception:
            kind = ""
        if "v5" not in kind:
            return jnp.bfloat16
    return jnp.float32


def _pick_tiles(B, C, HW):
    tc = C if C <= 512 else 512
    if B == 1 and C % 16 == 0 and C >= 16:
        # ensure >=2 parallel channel blocks so the phase-1 reduction
        # ("arbitrary" HW axis) does not strand the second TensorCore on v7x
        tc = min(tc, C // 2)
    thw = HW if HW <= 2048 else 2048
    return tc, thw


_VMEM_LIMIT = 48 * 1024 * 1024  # safe on v5e/v6e (128 MiB) and v7x (64 MiB)


def _dyrelub_fused(x_flat, w1, b1, w2, b2, compute_dtype):
    B, C, HW = x_flat.shape
    hid = w1.shape[1]

    # Regroup fc2 so the 4 coefficient families are contiguous C-row blocks
    # with C on the sublane axis (avoids any in-kernel relayout of theta).
    w2r = jnp.transpose(w2.astype(jnp.float32).reshape(hid, C, 4),
                        (2, 1, 0)).reshape(4 * C, hid)
    b2r = b2.astype(jnp.float32).reshape(C, 4).T.reshape(4 * C, 1)
    w1f = w1.astype(jnp.float32)
    b1f = b1.astype(jnp.float32).reshape(1, hid)

    kernel = functools.partial(_fused_kernel, hw_total=HW,
                               compute_dtype=compute_dtype)
    return pl.pallas_call(
        kernel,
        out_shape=jax.ShapeDtypeStruct((B, C, HW), x_flat.dtype),
        grid_spec=pltpu.PrefetchScalarGridSpec(
            num_scalar_prefetch=0,
            grid=(B,),
            in_specs=[
                pl.BlockSpec((None, C, HW), lambda b: (b, 0, 0)),
                pl.BlockSpec((C, hid), lambda b: (0, 0)),
                pl.BlockSpec((1, hid), lambda b: (0, 0)),
                pl.BlockSpec((4 * C, hid), lambda b: (0, 0)),
                pl.BlockSpec((4 * C, 1), lambda b: (0, 0)),
            ],
            out_specs=pl.BlockSpec((None, C, HW), lambda b: (b, 0, 0)),
        ),
        compiler_params=pltpu.CompilerParams(
            dimension_semantics=("parallel",),
            vmem_limit_bytes=_VMEM_LIMIT,
        ),
    )(x_flat, w1f, b1f, w2r, b2r)


def _dyrelub_two_pass(x_flat, w1, b1, w2, b2, compute_dtype, k=2):
    B, C, HW = x_flat.shape
    tc, thw = _pick_tiles(B, C, HW)
    nc, nhw = pl.cdiv(C, tc), pl.cdiv(HW, thw)

    # ---- phase 1: theta = mean_hw(x) (one read of x) ------------------------
    theta = pl.pallas_call(
        functools.partial(_theta_kernel, hw_total=HW, thw=thw),
        out_shape=jax.ShapeDtypeStruct((B, C, 1), jnp.float32),
        grid_spec=pltpu.PrefetchScalarGridSpec(
            num_scalar_prefetch=0,
            grid=(B, nc, nhw),                     # reduction (HW) axis last
            in_specs=[pl.BlockSpec((1, tc, thw), lambda b, ci, hi: (b, ci, hi))],
            out_specs=pl.BlockSpec((1, tc, 1), lambda b, ci, hi: (b, ci, 0)),
        ),
        compiler_params=pltpu.CompilerParams(
            dimension_semantics=("parallel", "parallel", "arbitrary"),
            vmem_limit_bytes=_VMEM_LIMIT,
        ),
    )(x_flat)[:, :, 0]                                         # (B, C)

    # ---- phase 2: tiny MLP + coefficient math (negligible FLOPs) in XLA ----
    h = jnp.maximum(theta @ w1.astype(jnp.float32) + b1.astype(jnp.float32), 0.0)
    t = 2.0 * jax.nn.sigmoid(h @ w2.astype(jnp.float32) + b2.astype(jnp.float32)) - 1.0
    lambdas = jnp.array([1.0] * k + [0.5] * k, jnp.float32)
    init_v = jnp.array([1.0] + [0.0] * (2 * k - 1), jnp.float32)
    coefs = (t.reshape(B, C, 2 * k) * lambdas + init_v).astype(jnp.float32)

    # ---- phase 3: tiled, lane-dense elementwise affine-max -----------------
    out_flat = pl.pallas_call(
        functools.partial(_apply_kernel, compute_dtype=compute_dtype),
        out_shape=jax.ShapeDtypeStruct((B, C, HW), x_flat.dtype),
        grid_spec=pltpu.PrefetchScalarGridSpec(
            num_scalar_prefetch=0,
            grid=(B, nc, nhw),
            in_specs=[pl.BlockSpec((1, tc, thw), lambda b, ci, hi: (b, ci, hi)),
                      pl.BlockSpec((1, tc, 4), lambda b, ci, hi: (b, ci, 0))],
            out_specs=pl.BlockSpec((1, tc, thw), lambda b, ci, hi: (b, ci, hi)),
        ),
        compiler_params=pltpu.CompilerParams(
            dimension_semantics=("parallel", "parallel", "parallel"),
            vmem_limit_bytes=_VMEM_LIMIT,
        ),
    )(x_flat, coefs)
    return out_flat


def dyrelub_pallas(x, w1, b1, w2, b2, k=2, *, force_two_pass=False):
    """x: (B, C, H, W) NCHW.  w1: (C, C//r), b1: (C//r,), w2: (C//r, 2kC), b2: (2kC,)."""
    assert k == 2, "kernel specialised for k=2 (DyReLUB default)"
    B, C, H, W = x.shape
    HW = H * W
    x_flat = x.reshape(B, C, HW)
    compute_dtype = _compute_dtype_for(x.dtype)

    # Fused-path VMEM estimate: double-buffered in + out slabs, f32 temporaries,
    # ~1 MiB headroom for weights / small intermediates.
    slab = C * HW
    itemsize = jnp.dtype(x.dtype).itemsize
    fused_est = 2 * slab * itemsize + 2 * slab * itemsize + 2 * slab * 4 + (1 << 20)
    use_fused = (not force_two_pass) and fused_est <= 36 * 1024 * 1024

    if use_fused:
        out_flat = _dyrelub_fused(x_flat, w1, b1, w2, b2, compute_dtype)
    else:
        out_flat = _dyrelub_two_pass(x_flat, w1, b1, w2, b2, compute_dtype, k=k)
    return out_flat.reshape(B, C, H, W)


def dyrelub_reference(x, w1, b1, w2, b2, k=2):
    """Pure-JAX reference mirroring the PyTorch module (f32 internally)."""
    B, C, H, W = x.shape
    xf = x.astype(jnp.float32)
    theta = jnp.mean(xf, axis=(2, 3))                          # (B, C)
    h = jnp.maximum(theta @ w1 + b1, 0.0)
    t = 2.0 * jax.nn.sigmoid(h @ w2 + b2) - 1.0                # (B, 2kC)
    lambdas = jnp.array([1.0] * k + [0.5] * k, jnp.float32)
    init_v = jnp.array([1.0] + [0.0] * (2 * k - 1), jnp.float32)
    coefs = t.reshape(B, C, 2 * k) * lambdas + init_v          # (B, C, 4)
    out = xf[..., None] * coefs[:, :, None, None, :k] + coefs[:, :, None, None, k:]
    return jnp.max(out, axis=-1)


if __name__ == "__main__":
    def make_params(key, C, reduction, k):
        hid = max(C // reduction, 1)
        k1, k2, k3, k4 = jax.random.split(key, 4)
        lim1 = 1.0 / jnp.sqrt(C)
        w1 = jax.random.uniform(k1, (C, hid), jnp.float32, -lim1, lim1)
        b1 = jax.random.uniform(k2, (hid,), jnp.float32, -lim1, lim1)
        lim2 = 1.0 / jnp.sqrt(hid)
        w2 = jax.random.uniform(k3, (hid, 2 * k * C), jnp.float32, -lim2, lim2)
        b2 = jax.random.uniform(k4, (2 * k * C,), jnp.float32, -lim2, lim2)
        return w1, b1, w2, b2

    k = 2
    key = jax.random.PRNGKey(0)
    kx, kp, kx2, kp2 = jax.random.split(key, 4)

    # --- config 1: B=2, C=32, 16x16, f32 — fused path and two-pass path ---
    B, C, H, W = 2, 32, 16, 16
    x = jax.random.normal(kx, (B, C, H, W), jnp.float32)
    w1, b1, w2, b2 = make_params(kp, C, 8, k)
    ref = dyrelub_reference(x, w1, b1, w2, b2, k=k)

    out_fused = jax.block_until_ready(dyrelub_pallas(x, w1, b1, w2, b2, k=k))
    assert out_fused.shape == (B, C, H, W)
    assert jnp.allclose(out_fused, ref, atol=1e-5, rtol=1e-5), "fused mismatch"

    out_2p = jax.block_until_ready(
        dyrelub_pallas(x, w1, b1, w2, b2, k=k, force_two_pass=True))
    assert jnp.allclose(out_2p, ref, atol=1e-5, rtol=1e-5), "two-pass mismatch"

    # --- config 2: same shape, bf16 activations through the fused path ----
    xb = x.astype(jnp.bfloat16)
    out_bf = jax.block_until_ready(dyrelub_pallas(xb, w1, b1, w2, b2, k=k))
    ref_bf = dyrelub_reference(xb, w1, b1, w2, b2, k=k)
    assert jnp.allclose(out_bf.astype(jnp.float32), ref_bf, atol=5e-2, rtol=5e-2), \
        "bf16 fused mismatch"

    # --- config 3: B=1, C=16, 48x48 — two-pass fallback with an HW tail ----
    B2, C2, H2, W2 = 1, 16, 48, 48
    x2 = jax.random.normal(kx2, (B2, C2, H2, W2), jnp.float32)
    w1b, b1b, w2b, b2b = make_params(kp2, C2, 8, k)
    ref2 = dyrelub_reference(x2, w1b, b1b, w2b, b2b, k=k)
    out2 = jax.block_until_ready(
        dyrelub_pallas(x2, w1b, b1b, w2b, b2b, k=k, force_two_pass=True))
    assert jnp.allclose(out2, ref2, atol=1e-5, rtol=1e-5), "tail-tile mismatch"

    print("KERNEL_OK")
</pallas_src>

<mosaic_0001>
module attributes {stable_mosaic.version = 11 : i64} {
  func.func @_fused_kernel(%arg0: i32, %arg1: memref<1x32x256xf32, #tpu.memory_space<vmem>>, %arg2: memref<32x4xf32, #tpu.memory_space<vmem>>, %arg3: memref<1x4xf32, #tpu.memory_space<vmem>>, %arg4: memref<128x4xf32, #tpu.memory_space<vmem>>, %arg5: memref<128x1xf32, #tpu.memory_space<vmem>>, %arg6: memref<1x32x256xf32, #tpu.memory_space<vmem>>) attributes {dimension_semantics = [#tpu.dimension_semantics<parallel>], iteration_bounds = array<i64: 2>, scalar_prefetch = 0 : i64, scratch_operands = 0 : i64, tpu.core_type = #tpu.core_type<tc>, window_params = [{transform_indices = @transform_0, window_bounds = array<i64: 1, 32, 256>}, {pipeline_mode = #tpu.pipeline_mode<synchronous>, transform_indices = @transform_1, window_bounds = array<i64: 32, 4>}, {pipeline_mode = #tpu.pipeline_mode<synchronous>, transform_indices = @transform_2, window_bounds = array<i64: 1, 4>}, {pipeline_mode = #tpu.pipeline_mode<synchronous>, transform_indices = @transform_3, window_bounds = array<i64: 128, 4>}, {pipeline_mode = #tpu.pipeline_mode<synchronous>, transform_indices = @transform_4, window_bounds = array<i64: 128, 1>}, {transform_indices = @transform_5, window_bounds = array<i64: 1, 32, 256>}]} {
    %c0 = arith.constant 0 : index
    %c0_0 = arith.constant 0 : index
    %c0_1 = arith.constant 0 : index
    %0 = vector.load %arg1[%c0, %c0_0, %c0_1] : memref<1x32x256xf32, #tpu.memory_space<vmem>>, vector<1x32x256xf32>
    %1 = vector.shape_cast %0 : vector<1x32x256xf32> to vector<32x256xf32>
    %cst = arith.constant dense<0.000000e+00> : vector<32xf32>
    %2 = vector.multi_reduction <add>, %1, %cst [1] : vector<32x256xf32> to vector<32xf32>
    %3 = vector.shape_cast %2 : vector<32xf32> to vector<32x1xf32>
    %cst_2 = arith.constant 3.906250e-03 : f32
    %4 = vector.broadcast %cst_2 : f32 to vector<32x1xf32>
    %5 = arith.mulf %3, %4 : vector<32x1xf32>
    %c0_3 = arith.constant 0 : index
    %c0_4 = arith.constant 0 : index
    %6 = vector.load %arg2[%c0_3, %c0_4] : memref<32x4xf32, #tpu.memory_space<vmem>>, vector<32x4xf32>
    %7 = vector.broadcast %5 : vector<32x1xf32> to vector<32x4xf32>
    %8 = arith.mulf %7, %6 : vector<32x4xf32>
    %cst_5 = arith.constant dense<0.000000e+00> : vector<4xf32>
    %9 = vector.multi_reduction <add>, %8, %cst_5 [0] : vector<32x4xf32> to vector<4xf32>
    %10 = vector.shape_cast %9 : vector<4xf32> to vector<1x4xf32>
    %c0_6 = arith.constant 0 : index
    %c0_7 = arith.constant 0 : index
    %11 = vector.load %arg3[%c0_6, %c0_7] : memref<1x4xf32, #tpu.memory_space<vmem>>, vector<1x4xf32>
    %12 = arith.addf %10, %11 : vector<1x4xf32>
    %cst_8 = arith.constant 0.000000e+00 : f32
    %13 = vector.broadcast %cst_8 : f32 to vector<1x4xf32>
    %14 = arith.maximumf %12, %13 : vector<1x4xf32>
    %c0_9 = arith.constant 0 : index
    %c0_10 = arith.constant 0 : index
    %15 = vector.load %arg4[%c0_9, %c0_10] : memref<128x4xf32, #tpu.memory_space<vmem>>, vector<128x4xf32>
    %16 = vector.broadcast %14 : vector<1x4xf32> to vector<128x4xf32>
    %17 = arith.mulf %16, %15 : vector<128x4xf32>
    %cst_11 = arith.constant dense<0.000000e+00> : vector<128xf32>
    %18 = vector.multi_reduction <add>, %17, %cst_11 [1] : vector<128x4xf32> to vector<128xf32>
    %19 = vector.shape_cast %18 : vector<128xf32> to vector<128x1xf32>
    %c0_12 = arith.constant 0 : index
    %c0_13 = arith.constant 0 : index
    %20 = vector.load %arg5[%c0_12, %c0_13] : memref<128x1xf32, #tpu.memory_space<vmem>>, vector<128x1xf32>
    %21 = arith.addf %19, %20 : vector<128x1xf32>
    %cst_14 = arith.constant 0.000000e+00 : f32
    %22 = vector.broadcast %cst_14 : f32 to vector<128x1xf32>
    %23 = arith.subf %22, %21 : vector<128x1xf32>
    %24 = math.exp %23 : vector<128x1xf32>
    %cst_15 = arith.constant 1.000000e+00 : f32
    %25 = vector.broadcast %cst_15 : f32 to vector<128x1xf32>
    %26 = arith.addf %25, %24 : vector<128x1xf32>
    %cst_16 = arith.constant 2.000000e+00 : f32
    %27 = vector.broadcast %cst_16 : f32 to vector<128x1xf32>
    %28 = arith.divf %27, %26 : vector<128x1xf32>
    %cst_17 = arith.constant 1.000000e+00 : f32
    %29 = vector.broadcast %cst_17 : f32 to vector<128x1xf32>
    %30 = arith.subf %28, %29 : vector<128x1xf32>
    %31 = vector.extract_strided_slice %30 {offsets = [0, 0], sizes = [32, 1], strides = [1, 1]} : vector<128x1xf32> to vector<32x1xf32>
    %cst_18 = arith.constant 1.000000e+00 : f32
    %32 = vector.broadcast %cst_18 : f32 to vector<32x1xf32>
    %33 = arith.addf %31, %32 : vector<32x1xf32>
    %34 = vector.extract_strided_slice %30 {offsets = [32, 0], sizes = [32, 1], strides = [1, 1]} : vector<128x1xf32> to vector<32x1xf32>
    %35 = vector.extract_strided_slice %30 {offsets = [64, 0], sizes = [32, 1], strides = [1, 1]} : vector<128x1xf32> to vector<32x1xf32>
    %cst_19 = arith.constant 5.000000e-01 : f32
    %36 = vector.broadcast %cst_19 : f32 to vector<32x1xf32>
    %37 = arith.mulf %35, %36 : vector<32x1xf32>
    %38 = vector.extract_strided_slice %30 {offsets = [96, 0], sizes = [32, 1], strides = [1, 1]} : vector<128x1xf32> to vector<32x1xf32>
    %cst_20 = arith.constant 5.000000e-01 : f32
    %39 = vector.broadcast %cst_20 : f32 to vector<32x1xf32>
    %40 = arith.mulf %38, %39 : vector<32x1xf32>
    %41 = vector.broadcast %33 : vector<32x1xf32> to vector<32x256xf32>
    %42 = arith.mulf %1, %41 : vector<32x256xf32>
    %43 = vector.broadcast %37 : vector<32x1xf32> to vector<32x256xf32>
    %44 = arith.addf %42, %43 : vector<32x256xf32>
    %45 = vector.broadcast %34 : vector<32x1xf32> to vector<32x256xf32>
    %46 = arith.mulf %1, %45 : vector<32x256xf32>
    %47 = vector.broadcast %40 : vector<32x1xf32> to vector<32x256xf32>
    %48 = arith.addf %46, %47 : vector<32x256xf32>
    %49 = arith.maximumf %44, %48 : vector<32x256xf32>
    %c0_21 = arith.constant 0 : index
    %c0_22 = arith.constant 0 : index
    %c0_23 = arith.constant 0 : index
    %50 = vector.load %arg6[%c0_21, %c0_22, %c0_23] : memref<1x32x256xf32, #tpu.memory_space<vmem>>, vector<1x32x256xf32>
    %51 = vector.shape_cast %50 : vector<1x32x256xf32> to vector<32x256xf32>
    %52 = vector.shape_cast %49 : vector<32x256xf32> to vector<1x32x256xf32>
    tpu.vector_store %arg6[%c0_21, %c0_22, %c0_23], %52 {strides = array<i32>} : memref<1x32x256xf32, #tpu.memory_space<vmem>>, vector<1x32x256xf32>,
    return
  }
  func.func @transform_0(%arg0: i32) -> (i32, i32, i32) {
    %c0_i32 = arith.constant 0 : i32
    %c0_i32_0 = arith.constant 0 : i32
    %c0_i32_1 = arith.constant 0 : i32
    return %arg0, %c0_i32, %c0_i32_0 : i32, i32, i32
  }
  func.func @transform_1(%arg0: i32) -> (i32, i32) {
    %c0_i32 = arith.constant 0 : i32
    %c0_i32_0 = arith.constant 0 : i32
    %c0_i32_1 = arith.constant 0 : i32
    return %c0_i32, %c0_i32_0 : i32, i32
  }
  func.func @transform_2(%arg0: i32) -> (i32, i32) {
    %c0_i32 = arith.constant 0 : i32
    %c0_i32_0 = arith.constant 0 : i32
    %c0_i32_1 = arith.constant 0 : i32
    return %c0_i32, %c0_i32_0 : i32, i32
  }
  func.func @transform_3(%arg0: i32) -> (i32, i32) {
    %c0_i32 = arith.constant 0 : i32
    %c0_i32_0 = arith.constant 0 : i32
    %c0_i32_1 = arith.constant 0 : i32
    return %c0_i32, %c0_i32_0 : i32, i32
  }
  func.func @transform_4(%arg0: i32) -> (i32, i32) {
    %c0_i32 = arith.constant 0 : i32
    %c0_i32_0 = arith.constant 0 : i32
    %c0_i32_1 = arith.constant 0 : i32
    return %c0_i32, %c0_i32_0 : i32, i32
  }
  func.func @transform_5(%arg0: i32) -> (i32, i32, i32) {
    %c0_i32 = arith.constant 0 : i32
    %c0_i32_0 = arith.constant 0 : i32
    %c0_i32_1 = arith.constant 0 : i32
    return %arg0, %c0_i32, %c0_i32_0 : i32, i32, i32
  }
}

</mosaic_0001>

<llo_original>
// kernel: tpu_custom_call.1
$region0: #{tpu_custom_call.1}
  #allocation0 [shape = 'u32[]', space=smem, size = 0x4, offset = 0x4, fixed_abs, tag = 'smem constant byte address 0x4 - core index']
  #allocation1 [shape = 'u32[72,128]{1,0:T(1,128)}', space=vmem, size = 0x9000, scoped, tag = 'internal scratch']
  %s0 = inlined_call_operand.vmem [shape: f32[2,32,256], index: 0, kind: input, shape index: {}]
  %s1 = inlined_call_operand.vmem [shape: f32[32,4], index: 1, kind: input, shape index: {}]
  %s2 = inlined_call_operand.vmem [shape: f32[1,4], index: 2, kind: input, shape index: {}]
  %s3 = inlined_call_operand.vmem [shape: f32[128,4], index: 3, kind: input, shape index: {}]
  %s4 = inlined_call_operand.vmem [shape: f32[128,1], index: 4, kind: input, shape index: {}]
  %s5 = inlined_call_operand.hbm [shape: f32[2,32,256], index: 5, kind: output, shape index: {}]
  %s6 = sld [smem:[#allocation0]]
  $region53: #{tpu_custom_call.1} parent=0
    _
  %s8 = ssub.s32 1, %s6
  %s9 = scalar_select 0, %s8, %s6
  $region1: #{tpu_custom_call.1} parent=0
    #allocation2 [shape = 'u8[65536]{0}', space=vmem, size = 0x10000, scoped, tag = 'output window, operand 0']
    #allocation3 [shape = 's32[2]{0}', space=sflag, size = 0x8, scoped, tag = 'scoped memory for tpu_custom_call.1']
    %10 = vsyncpa [#allocation3], 0
    %s11 = scalar_lea.sflag [#allocation3], 1
    %12 = vsyncpa %s11, 0
    loop: start=0, step=1, limit=4
    $region2: #{tpu_custom_call.1} parent=1 // loop_pre_header
      _
    $region3: #{tpu_custom_call.1} parent=1 // loop_header
      %s14 = sphi 0, %s18
      %p15 = scmp.ge.s32.totalorder %s14, 4
      %s24 = sphi 0, %s26
      %s27 = sphi 0, %s24
      %s28 = sphi 0, %s27
      %s44 = sphi 0, %s28
      %s48 = sphi 0, %s48
      %s50 = sphi 0, %s48
      %s51 = sphi 0, %s50
      %s65 = sphi 0, %s51
      %s69 = sphi 0, %s69
      %s71 = sphi 0, %s69
      %s72 = sphi 0, %s71
      %s86 = sphi 0, %s72
      %s90 = sphi 0, %s90
      %s92 = sphi 0, %s90
      %s93 = sphi 0, %s92
      %s107 = sphi 0, %s93
      %s111 = sphi 0, %s111
      %s113 = sphi 0, %s111
      %s114 = sphi 0, %s113
      %s128 = sphi 0, %s114
      %s134 = sphi 0, %s136
      %s137 = sphi 0, %s134
      %s138 = sphi 0, %s137
      %s154 = sphi 0, %s138
    $region4: #{tpu_custom_call.1} parent=1 // loop_header_branch
      %17 = sbr.rel (%p15) target = $region8
    $region5: #{tpu_custom_call.1} parent=1 // loop_body
      %s19 = ssub.s32 %s14, 1
      %s20 = ssub.s32 %s14, 2
      %s21 = sadd.s32 %s14, 1
      %s22 = ssub.s32 %s14, %s21
      %p23 = scmp.eq.s32.totalorder %s22, 0
      %s25 = sadd.s32 %s24, 1
      %s26 = scalar_select %p23, %s24, %s25
      %p29 = pneg %p23
      %p30 = scmp.eq.s32.totalorder %s14, 1
      %p31 = por %p29, %p30
      %p32 = scmp.ne.s32.totalorder %s24, %s27
      %p33 = scmp.eq.s32.totalorder %s14, 0
      %p34 = por %p32, %p33
      %p35 = scmp.ne.s32.totalorder %s24, %s27
      %p36 = scmp.eq.s32.totalorder %s19, 1
      %p37 = por %p35, %p36
      %p38 = scmp.ne.s32.totalorder %s27, %s28
      %p39 = scmp.eq.s32.totalorder %s19, 0
      %p40 = por %p38, %p39
      %p41 = scmp.ne.s32.totalorder %s27, %s28
      %p42 = scmp.eq.s32.totalorder %s20, 1
      %p43 = por %p41, %p42
      %p45 = scmp.ne.s32.totalorder %s28, %s44
      %p46 = scmp.eq.s32.totalorder %s20, 0
      %p47 = por %p45, %p46
      %s49 = sadd.s32 %s48, 1
      %p52 = scmp.eq.s32.totalorder %s14, 1
      %p53 = scmp.ne.s32.totalorder %s48, %s50
      %p54 = scmp.eq.s32.totalorder %s14, 0
      %p55 = por %p53, %p54
      %p56 = scmp.ne.s32.totalorder %s48, %s50
      %p57 = scmp.eq.s32.totalorder %s19, 1
      %p58 = por %p56, %p57
      %p59 = scmp.ne.s32.totalorder %s50, %s51
      %p60 = scmp.eq.s32.totalorder %s19, 0
      %p61 = por %p59, %p60
      %p62 = scmp.ne.s32.totalorder %s50, %s51
      %p63 = scmp.eq.s32.totalorder %s20, 1
      %p64 = por %p62, %p63
      %p66 = scmp.ne.s32.totalorder %s51, %s65
      %p67 = scmp.eq.s32.totalorder %s20, 0
      %p68 = por %p66, %p67
      %s70 = sadd.s32 %s69, 1
      %p73 = scmp.eq.s32.totalorder %s14, 1
      %p74 = scmp.ne.s32.totalorder %s69, %s71
      %p75 = scmp.eq.s32.totalorder %s14, 0
      %p76 = por %p74, %p75
      %p77 = scmp.ne.s32.totalorder %s69, %s71
      %p78 = scmp.eq.s32.totalorder %s19, 1
      %p79 = por %p77, %p78
      %p80 = scmp.ne.s32.totalorder %s71, %s72
      %p81 = scmp.eq.s32.totalorder %s19, 0
      %p82 = por %p80, %p81
      %p83 = scmp.ne.s32.totalorder %s71, %s72
      %p84 = scmp.eq.s32.totalorder %s20, 1
      %p85 = por %p83, %p84
      %p87 = scmp.ne.s32.totalorder %s72, %s86
      %p88 = scmp.eq.s32.totalorder %s20, 0
      %p89 = por %p87, %p88
      %s91 = sadd.s32 %s90, 1
      %p94 = scmp.eq.s32.totalorder %s14, 1
      %p95 = scmp.ne.s32.totalorder %s90, %s92
      %p96 = scmp.eq.s32.totalorder %s14, 0
      %p97 = por %p95, %p96
      %p98 = scmp.ne.s32.totalorder %s90, %s92
      %p99 = scmp.eq.s32.totalorder %s19, 1
      %p100 = por %p98, %p99
      %p101 = scmp.ne.s32.totalorder %s92, %s93
      %p102 = scmp.eq.s32.totalorder %s19, 0
      %p103 = por %p101, %p102
      %p104 = scmp.ne.s32.totalorder %s92, %s93
      %p105 = scmp.eq.s32.totalorder %s20, 1
      %p106 = por %p104, %p105
      %p108 = scmp.ne.s32.totalorder %s93, %s107
      %p109 = scmp.eq.s32.totalorder %s20, 0
      %p110 = por %p108, %p109
      %s112 = sadd.s32 %s111, 1
      %p115 = scmp.eq.s32.totalorder %s14, 1
      %p116 = scmp.ne.s32.totalorder %s111, %s113
      %p117 = scmp.eq.s32.totalorder %s14, 0
      %p118 = por %p116, %p117
      %p119 = scmp.ne.s32.totalorder %s111, %s113
      %p120 = scmp.eq.s32.totalorder %s19, 1
      %p121 = por %p119, %p120
      %p122 = scmp.ne.s32.totalorder %s113, %s114
      %p123 = scmp.eq.s32.totalorder %s19, 0
      %p124 = por %p122, %p123
      %p125 = scmp.ne.s32.totalorder %s113, %s114
      %p126 = scmp.eq.s32.totalorder %s20, 1
      %p127 = por %p125, %p126
      %p129 = scmp.ne.s32.totalorder %s114, %s128
      %p130 = scmp.eq.s32.totalorder %s20, 0
      %p131 = por %p129, %p130
      %s132 = ssub.s32 %s14, %s21
      %p133 = scmp.eq.s32.totalorder %s132, 0
      %s135 = sadd.s32 %s134, 1
      %s136 = scalar_select %p133, %s134, %s135
      %p139 = pneg %p133
      %p140 = scmp.eq.s32.totalorder %s14, 1
      %p141 = por %p139, %p140
      %p142 = scmp.ne.s32.totalorder %s134, %s137
      %p143 = scmp.eq.s32.totalorder %s14, 0
      %p144 = por %p142, %p143
      %p145 = scmp.ne.s32.totalorder %s134, %s137
      %p146 = scmp.eq.s32.totalorder %s19, 1
      %p147 = por %p145, %p146
      %p148 = scmp.ne.s32.totalorder %s137, %s138
      %p149 = scmp.eq.s32.totalorder %s19, 0
      %p150 = por %p148, %p149
      %p151 = scmp.ne.s32.totalorder %s137, %s138
      %p152 = scmp.eq.s32.totalorder %s20, 1
      %p153 = por %p151, %p152
      %p155 = scmp.ne.s32.totalorder %s138, %s154
      %p156 = scmp.eq.s32.totalorder %s20, 0
      %p157 = por %p155, %p156
      %p158 = scmp.le.s32.totalorder 1, %s14
      %p159 = scmp.lt.s32.totalorder %s14, 3
      %p160 = pnand %p158, %p159
      %p161 = pneg %p160
      // Predicated region
      $region9: #{tpu_custom_call.1} parent=5 // pred_check
        _
      $region10: #{tpu_custom_call.1} parent=5 // pred_check_branch
        %163 = sbr.rel (%p160) target = $region12
      $region11: #{tpu_custom_call.1} parent=5 // pred_region
        %s164 = ssub.s32 %s14, 1
        // Predicated region
        $region13: #{tpu_custom_call.1} parent=11 // pred_check
          %p165 = pneg %p61
        $region14: #{tpu_custom_call.1} parent=11 // pred_check_branch
          %167 = sbr.rel (%p165) target = $region16
        $region15: #{tpu_custom_call.1} parent=11 // pred_region
          _
        $region16: #{tpu_custom_call.1} parent=11 // pred_fallthru
          _
        // Predicated region
        $region17: #{tpu_custom_call.1} parent=11 // pred_check
          %p168 = pneg %p82
        $region18: #{tpu_custom_call.1} parent=11 // pred_check_branch
          %170 = sbr.rel (%p168) target = $region20
        $region19: #{tpu_custom_call.1} parent=11 // pred_region
          _
        $region20: #{tpu_custom_call.1} parent=11 // pred_fallthru
          _
        // Predicated region
        $region21: #{tpu_custom_call.1} parent=11 // pred_check
          %p171 = pneg %p103
        $region22: #{tpu_custom_call.1} parent=11 // pred_check_branch
          %173 = sbr.rel (%p171) target = $region24
        $region23: #{tpu_custom_call.1} parent=11 // pred_region
          _
        $region24: #{tpu_custom_call.1} parent=11 // pred_fallthru
          _
        // Predicated region
        $region25: #{tpu_custom_call.1} parent=11 // pred_check
          %p174 = pneg %p124
        $region26: #{tpu_custom_call.1} parent=11 // pred_check_branch
          %176 = sbr.rel (%p174) target = $region28
        $region27: #{tpu_custom_call.1} parent=11 // pred_region
          _
        $region28: #{tpu_custom_call.1} parent=11 // pred_fallthru
          _
      $region12: #{tpu_custom_call.1} parent=5 // pred_fallthru
        _
      %p177 = scmp.lt.s32.totalorder %s14, 2
      // Predicated region
      $region29: #{tpu_custom_call.1} parent=5 // pred_check
        %p178 = pneg %p177
      $region30: #{tpu_custom_call.1} parent=5 // pred_check_branch
        %180 = sbr.rel (%p178) target = $region32
      $region31: #{tpu_custom_call.1} parent=5 // pred_region
        // Predicated region
        $region33: #{tpu_custom_call.1} parent=31 // pred_check
          %p181 = pneg %p34
        $region34: #{tpu_custom_call.1} parent=31 // pred_check_branch
          %183 = sbr.rel (%p181) target = $region36
        $region35: #{tpu_custom_call.1} parent=31 // pred_region
          %p184 = scmp.lt.s32.totalorder %s14, 1
          %s185 = scalar_select %p184, %s14, 1
          %s186 = smul.addr %s185, 8
          %s187 = smul.addr %s186, 8
          %s188 = scalar_lea.vmem %s0, %s187
        $region36: #{tpu_custom_call.1} parent=31 // pred_fallthru
          _
      $region32: #{tpu_custom_call.1} parent=5 // pred_fallthru
        _
      %p189 = scmp.le.s32.totalorder 1, %s14
      %p190 = scmp.lt.s32.totalorder %s14, 3
      %p191 = pnand %p189, %p190
      %p192 = pneg %p191
      // Predicated region
      $region37: #{tpu_custom_call.1} parent=5 // pred_check
        _
      $region38: #{tpu_custom_call.1} parent=5 // pred_check_branch
        %194 = sbr.rel (%p191) target = $region40
      $region39: #{tpu_custom_call.1} parent=5 // pred_region
        %s195 = ssub.s32 %s14, 1
        %p196 = scmp.lt.s32.totalorder %s19, 1
        %s197 = scalar_select %p196, %s19, 1
        %s198 = smul.addr %s197, 8
        %s199 = smul.addr %s198, 8
        %s200 = scalar_lea.vmem %s0, %s199
        %p201 = pneg %p40
        %p202 = pneg %p37
        %p203 = pneg %p61
        %p204 = pneg %p58
        %p205 = pneg %p82
        %p206 = pneg %p79
        %p207 = pneg %p103
        %p208 = pneg %p100
        %p209 = pneg %p124
        %p210 = pneg %p121
        %p211 = pneg %p150
        %p212 = pneg %p147
        %s213 = sand.u32 %s137, 1
        %s214 = scalar_lea.sflag [#allocation3], %s213
        %s215 = sand.u32 %s137, 1
        %s216 = smul.addr %s215, 64
        %s217 = scalar_lea.vmem [#allocation2], %s216
        %p218 = scmp.lt.s32.totalorder %s19, 1
        %s219 = scalar_select %p218, %s19, 1
        %s220 = smul.addr %s219, 8
        %s221 = smul.addr %s220, 8
        %s222 = scalar_lea.vmem %s0, %s221
        %v223 = vld [vmem:[%s222] sm:$0xff]
        %v224 = vld [vmem:[%s222 + $0x8] sm:$0xff]
        %v225 = vld [vmem:[%s222 + $0x10] sm:$0xff]
        %v226 = vld [vmem:[%s222 + $0x18] sm:$0xff]
        %v227 = vld [vmem:[%s222 + $0x20] sm:$0xff]
        %v228 = vld [vmem:[%s222 + $0x28] sm:$0xff]
        %v229 = vld [vmem:[%s222 + $0x30] sm:$0xff]
        %v230 = vld [vmem:[%s222 + $0x38] sm:$0xff]
        %v231 = vadd.f32 %v223, %v224
        %232 = vadd.xlane.f32.xlu0 %v231
        %v233 = vpop.xlane.xlu0 %232
        %v234 = vadd.f32 %v225, %v226
        %235 = vadd.xlane.f32.xlu0 %v234
        %v236 = vpop.xlane.xlu0 %235
        %v237 = vadd.f32 %v227, %v228
        %238 = vadd.xlane.f32.xlu0 %v237
        %v239 = vpop.xlane.xlu0 %238
        %v240 = vadd.f32 %v229, %v230
        %241 = vadd.xlane.f32.xlu0 %v240
        %v242 = vpop.xlane.xlu0 %241
        %v243 = vmul.f32 %v233, 0.00390625
        %v244 = vmul.f32 %v236, 0.00390625
        %v245 = vmul.f32 %v239, 0.00390625
        %v246 = vmul.f32 %v242, 0.00390625
        %v247 = vld [vmem:[%s1] sm:$0xff]
        %v248 = vld [vmem:[%s1 + $0x8] sm:$0xff]
        %v249 = vld [vmem:[%s1 + $0x10] sm:$0xff]
        %v250 = vld [vmem:[%s1 + $0x18] sm:$0xff]
        %v251 = vmul.f32 %v243, %v247
        %v252 = vmul.f32 %v244, %v248
        %v253 = vmul.f32 %v245, %v249
        %v254 = vmul.f32 %v246, %v250
        %vm255 = vcmask 31744
        %v256 = vsel %vm255, %v251, 0.0
        %v257 = vsel %vm255, %v252, 0.0
        %v258 = vadd.f32 %v256, %v257
        %v259 = vsel %vm255, %v253, 0.0
        %v260 = vadd.f32 %v258, %v259
        %v261 = vsel %vm255, %v254, 0.0
        %v262 = vadd.f32 %v260, %v261
        %v263 = vrot.slane %v262, 4
        %v264 = vadd.f32 %v262, %v263
        %v265 = vrot.slane %v264, 2
        %v266 = vadd.f32 %v264, %v265
        %v267 = vrot.slane %v266, 1
        %v268 = vadd.f32 %v266, %v267
        %v269 = vld [vmem:[%s2] sm:$0x1]
        %v270 = vadd.f32 %v268, %v269
        %v271 = vmax.f32 %v270, 0.0
        %v272 = vld [vmem:[%s3] sm:$0xff]
        %v273 = vld [vmem:[%s3 + $0x8] sm:$0xff]
        %v274 = vld [vmem:[%s3 + $0x10] sm:$0xff]
        %v275 = vld [vmem:[%s3 + $0x18] sm:$0xff]
        %v276 = vld [vmem:[%s3 + $0x20] sm:$0xff]
        %v277 = vld [vmem:[%s3 + $0x28] sm:$0xff]
        %v278 = vld [vmem:[%s3 + $0x30] sm:$0xff]
        %v279 = vld [vmem:[%s3 + $0x38] sm:$0xff]
        %v280 = vld [vmem:[%s3 + $0x40] sm:$0xff]
        %v281 = vld [vmem:[%s3 + $0x48] sm:$0xff]
        %v282 = vld [vmem:[%s3 + $0x50] sm:$0xff]
        %v283 = vld [vmem:[%s3 + $0x58] sm:$0xff]
        %v284 = vld [vmem:[%s3 + $0x60] sm:$0xff]
        %v285 = vld [vmem:[%s3 + $0x68] sm:$0xff]
        %v286 = vld [vmem:[%s3 + $0x70] sm:$0xff]
        %v287 = vld [vmem:[%s3 + $0x78] sm:$0xff]
        %v288 = vperm.slane %v271, 0
        %v289 = vmul.f32 %v288, %v272
        %v290 = vmul.f32 %v288, %v273
        %v291 = vmul.f32 %v288, %v274
        %v292 = vmul.f32 %v288, %v275
        %v293 = vmul.f32 %v288, %v276
        %v294 = vmul.f32 %v288, %v277
        %v295 = vmul.f32 %v288, %v278
        %v296 = vmul.f32 %v288, %v279
        %v297 = vmul.f32 %v288, %v280
        %v298 = vmul.f32 %v288, %v281
        %v299 = vmul.f32 %v288, %v282
        %v300 = vmul.f32 %v288, %v283
        %v301 = vmul.f32 %v288, %v284
        %v302 = vmul.f32 %v288, %v285
        %v303 = vmul.f32 %v288, %v286
        %v304 = vmul.f32 %v288, %v287
        %v305 = vsel %vm255, %v289, 0.0
        %306 = vadd.xlane.f32.xlu0 %v305
        %v307 = vpop.xlane.xlu0 %306
        %v308 = vsel %vm255, %v290, 0.0
        %309 = vadd.xlane.f32.xlu0 %v308
        %v310 = vpop.xlane.xlu0 %309
        %v311 = vsel %vm255, %v291, 0.0
        %312 = vadd.xlane.f32.xlu0 %v311
        %v313 = vpop.xlane.xlu0 %312
        %v314 = vsel %vm255, %v292, 0.0
        %315 = vadd.xlane.f32.xlu0 %v314
        %v316 = vpop.xlane.xlu0 %315
        %v317 = vsel %vm255, %v293, 0.0
        %318 = vadd.xlane.f32.xlu0 %v317
        %v319 = vpop.xlane.xlu0 %318
        %v320 = vsel %vm255, %v294, 0.0
        %321 = vadd.xlane.f32.xlu0 %v320
        %v322 = vpop.xlane.xlu0 %321
        %v323 = vsel %vm255, %v295, 0.0
        %324 = vadd.xlane.f32.xlu0 %v323
        %v325 = vpop.xlane.xlu0 %324
        %v326 = vsel %vm255, %v296, 0.0
        %327 = vadd.xlane.f32.xlu0 %v326
        %v328 = vpop.xlane.xlu0 %327
        %v329 = vsel %vm255, %v297, 0.0
        %330 = vadd.xlane.f32.xlu0 %v329
        %v331 = vpop.xlane.xlu0 %330
        %v332 = vsel %vm255, %v298, 0.0
        %333 = vadd.xlane.f32.xlu0 %v332
        %v334 = vpop.xlane.xlu0 %333
        %v335 = vsel %vm255, %v299, 0.0
        %336 = vadd.xlane.f32.xlu0 %v335
        %v337 = vpop.xlane.xlu0 %336
        %v338 = vsel %vm255, %v300, 0.0
        %339 = vadd.xlane.f32.xlu0 %v338
        %v340 = vpop.xlane.xlu0 %339
        %v341 = vsel %vm255, %v301, 0.0
        %342 = vadd.xlane.f32.xlu0 %v341
        %v343 = vpop.xlane.xlu0 %342
        %v344 = vsel %vm255, %v302, 0.0
        %345 = vadd.xlane.f32.xlu0 %v344
        %v346 = vpop.xlane.xlu0 %345
        %v347 = vsel %vm255, %v303, 0.0
        %348 = vadd.xlane.f32.xlu0 %v347
        %v349 = vpop.xlane.xlu0 %348
        %v350 = vsel %vm255, %v304, 0.0
        %351 = vadd.xlane.f32.xlu0 %v350
        %v352 = vpop.xlane.xlu0 %351
        %v353 = vld [vmem:[%s4] sm:$0xff]
        %v354 = vld [vmem:[%s4 + $0x8] sm:$0xff]
        %v355 = vld [vmem:[%s4 + $0x10] sm:$0xff]
        %v356 = vld [vmem:[%s4 + $0x18] sm:$0xff]
        %v357 = vld [vmem:[%s4 + $0x20] sm:$0xff]
        %v358 = vld [vmem:[%s4 + $0x28] sm:$0xff]
        %v359 = vld [vmem:[%s4 + $0x30] sm:$0xff]
        %v360 = vld [vmem:[%s4 + $0x38] sm:$0xff]
        %v361 = vld [vmem:[%s4 + $0x40] sm:$0xff]
        %v362 = vld [vmem:[%s4 + $0x48] sm:$0xff]
        %v363 = vld [vmem:[%s4 + $0x50] sm:$0xff]
        %v364 = vld [vmem:[%s4 + $0x58] sm:$0xff]
        %v365 = vld [vmem:[%s4 + $0x60] sm:$0xff]
        %v366 = vld [vmem:[%s4 + $0x68] sm:$0xff]
        %v367 = vld [vmem:[%s4 + $0x70] sm:$0xff]
        %v368 = vld [vmem:[%s4 + $0x78] sm:$0xff]
        %v369 = vadd.f32 %v307, %v353
        %v370 = vadd.f32 %v310, %v354
        %v371 = vadd.f32 %v313, %v355
        %v372 = vadd.f32 %v316, %v356
        %v373 = vadd.f32 %v319, %v357
        %v374 = vadd.f32 %v322, %v358
        %v375 = vadd.f32 %v325, %v359
        %v376 = vadd.f32 %v328, %v360
        %v377 = vadd.f32 %v331, %v361
        %v378 = vadd.f32 %v334, %v362
        %v379 = vadd.f32 %v337, %v363
        %v380 = vadd.f32 %v340, %v364
        %v381 = vadd.f32 %v343, %v365
        %v382 = vadd.f32 %v346, %v366
        %v383 = vadd.f32 %v349, %v367
        %v384 = vadd.f32 %v352, %v368
        %v385 = vsub.f32 0.0, %v369
        %v386 = vsub.f32 0.0, %v370
        %v387 = vsub.f32 0.0, %v371
        %v388 = vsub.f32 0.0, %v372
        %v389 = vsub.f32 0.0, %v373
        %v390 = vsub.f32 0.0, %v374
        %v391 = vsub.f32 0.0, %v375
        %v392 = vsub.f32 0.0, %v376
        %v393 = vsub.f32 0.0, %v377
        %v394 = vsub.f32 0.0, %v378
        %v395 = vsub.f32 0.0, %v379
        %v396 = vsub.f32 0.0, %v380
        %v397 = vsub.f32 0.0, %v381
        %v398 = vsub.f32 0.0, %v382
        %v399 = vsub.f32 0.0, %v383
        %v400 = vsub.f32 0.0, %v384
        %v401 = vmul.f32 %v385, 1.442695
        %v402 = vpow.pop %v401
        %v403 = vmul.f32 %v386, 1.442695
        %v404 = vpow.pop %v403
        %v405 = vmul.f32 %v387, 1.442695
        %v406 = vpow.pop %v405
        %v407 = vmul.f32 %v388, 1.442695
        %v408 = vpow.pop %v407
        %v409 = vmul.f32 %v389, 1.442695
        %v410 = vpow.pop %v409
        %v411 = vmul.f32 %v390, 1.442695
        %v412 = vpow.pop %v411
        %v413 = vmul.f32 %v391, 1.442695
        %v414 = vpow.pop %v413
        %v415 = vmul.f32 %v392, 1.442695
        %v416 = vpow.pop %v415
        %v417 = vmul.f32 %v393, 1.442695
        %v418 = vpow.pop %v417
        %v419 = vmul.f32 %v394, 1.442695
        %v420 = vpow.pop %v419
        %v421 = vmul.f32 %v395, 1.442695
        %v422 = vpow.pop %v421
        %v423 = vmul.f32 %v396, 1.442695
        %v424 = vpow.pop %v423
        %v425 = vmul.f32 %v397, 1.442695
        %v426 = vpow.pop %v425
        %v427 = vmul.f32 %v398, 1.442695
        %v428 = vpow.pop %v427
        %v429 = vmul.f32 %v399, 1.442695
        %v430 = vpow.pop %v429
        %v431 = vmul.f32 %v400, 1.442695
        %v432 = vpow.pop %v431
        %v433 = vadd.f32 %v402, 1.0
        %v434 = vadd.f32 %v404, 1.0
        %v435 = vadd.f32 %v406, 1.0
        %v436 = vadd.f32 %v408, 1.0
        %v437 = vadd.f32 %v410, 1.0
        %v438 = vadd.f32 %v412, 1.0
        %v439 = vadd.f32 %v414, 1.0
        %v440 = vadd.f32 %v416, 1.0
        %v441 = vadd.f32 %v418, 1.0
        %v442 = vadd.f32 %v420, 1.0
        %v443 = vadd.f32 %v422, 1.0
        %v444 = vadd.f32 %v424, 1.0
        %v445 = vadd.f32 %v426, 1.0
        %v446 = vadd.f32 %v428, 1.0
        %v447 = vadd.f32 %v430, 1.0
        %v448 = vadd.f32 %v432, 1.0
        %v449 = vrcp.pop %v433
        %v450 = vmul.f32 %v433, %v449
        %v451 = vsub.f32 1.0, %v450
        %v452 = vmul.f32 %v449, %v451
        %v453 = vadd.f32 %v449, %v452
        %vm454 = vweird.f32 %v433
        %vm455 = vweird.f32 %v449
        %vm456 = vmor %vm454, %vm455
        %v457 = vsel %vm456, %v449, %v453
        %v458 = vand.u32 2147483647, %v433
        %vm459 = vcmp.eq.f32.partialorder %v458, 8.507059e+37
        %v460 = vand.u32 %v433, 2147483648
        %v461 = vor.u32 1.1754944e-38, %v460
        %v462 = vsel %vm459, %v461, %v457
        %v463 = vmul.f32 2.0, %v462
        %v464 = vrcp.pop %v434
        %v465 = vmul.f32 %v434, %v464
        %v466 = vsub.f32 1.0, %v465
        %v467 = vmul.f32 %v464, %v466
        %v468 = vadd.f32 %v464, %v467
        %vm469 = vweird.f32 %v434
        %vm470 = vweird.f32 %v464
        %vm471 = vmor %vm469, %vm470
        %v472 = vsel %vm471, %v464, %v468
        %v473 = vand.u32 2147483647, %v434
        %vm474 = vcmp.eq.f32.partialorder %v473, 8.507059e+37
        %v475 = vand.u32 %v434, 2147483648
        %v476 = vor.u32 1.1754944e-38, %v475
        %v477 = vsel %vm474, %v476, %v472
        %v478 = vmul.f32 2.0, %v477
        %v479 = vrcp.pop %v435
        %v480 = vmul.f32 %v435, %v479
        %v481 = vsub.f32 1.0, %v480
        %v482 = vmul.f32 %v479, %v481
        %v483 = vadd.f32 %v479, %v482
        %vm484 = vweird.f32 %v435
        %vm485 = vweird.f32 %v479
        %vm486 = vmor %vm484, %vm485
        %v487 = vsel %vm486, %v479, %v483
        %v488 = vand.u32 2147483647, %v435
        %vm489 = vcmp.eq.f32.partialorder %v488, 8.507059e+37
        %v490 = vand.u32 %v435, 2147483648
        %v491 = vor.u32 1.1754944e-38, %v490
        %v492 = vsel %vm489, %v491, %v487
        %v493 = vmul.f32 2.0, %v492
        %v494 = vrcp.pop %v436
        %v495 = vmul.f32 %v436, %v494
        %v496 = vsub.f32 1.0, %v495
        %v497 = vmul.f32 %v494, %v496
        %v498 = vadd.f32 %v494, %v497
        %vm499 = vweird.f32 %v436
        %vm500 = vweird.f32 %v494
        %vm501 = vmor %vm499, %vm500
        %v502 = vsel %vm501, %v494, %v498
        %v503 = vand.u32 2147483647, %v436
        %vm504 = vcmp.eq.f32.partialorder %v503, 8.507059e+37
        %v505 = vand.u32 %v436, 2147483648
        %v506 = vor.u32 1.1754944e-38, %v505
        %v507 = vsel %vm504, %v506, %v502
        %v508 = vmul.f32 2.0, %v507
        %v509 = vrcp.pop %v437
        %v510 = vmul.f32 %v437, %v509
        %v511 = vsub.f32 1.0, %v510
        %v512 = vmul.f32 %v509, %v511
        %v513 = vadd.f32 %v509, %v512
        %vm514 = vweird.f32 %v437
        %vm515 = vweird.f32 %v509
        %vm516 = vmor %vm514, %vm515
        %v517 = vsel %vm516, %v509, %v513
        %v518 = vand.u32 2147483647, %v437
        %vm519 = vcmp.eq.f32.partialorder %v518, 8.507059e+37
        %v520 = vand.u32 %v437, 2147483648
        %v521 = vor.u32 1.1754944e-38, %v520
        %v522 = vsel %vm519, %v521, %v517
        %v523 = vmul.f32 2.0, %v522
        %v524 = vrcp.pop %v438
        %v525 = vmul.f32 %v438, %v524
        %v526 = vsub.f32 1.0, %v525
        %v527 = vmul.f32 %v524, %v526
        %v528 = vadd.f32 %v524, %v527
        %vm529 = vweird.f32 %v438
        %vm530 = vweird.f32 %v524
        %vm531 = vmor %vm529, %vm530
        %v532 = vsel %vm531, %v524, %v528
        %v533 = vand.u32 2147483647, %v438
        %vm534 = vcmp.eq.f32.partialorder %v533, 8.507059e+37
        %v535 = vand.u32 %v438, 2147483648
        %v536 = vor.u32 1.1754944e-38, %v535
        %v537 = vsel %vm534, %v536, %v532
        %v538 = vmul.f32 2.0, %v537
        %v539 = vrcp.pop %v439
        %v540 = vmul.f32 %v439, %v539
        %v541 = vsub.f32 1.0, %v540
        %v542 = vmul.f32 %v539, %v541
        %v543 = vadd.f32 %v539, %v542
        %vm544 = vweird.f32 %v439
        %vm545 = vweird.f32 %v539
        %vm546 = vmor %vm544, %vm545
        %v547 = vsel %vm546, %v539, %v543
        %v548 = vand.u32 2147483647, %v439
        %vm549 = vcmp.eq.f32.partialorder %v548, 8.507059e+37
        %v550 = vand.u32 %v439, 2147483648
        %v551 = vor.u32 1.1754944e-38, %v550
        %v552 = vsel %vm549, %v551, %v547
        %v553 = vmul.f32 2.0, %v552
        %v554 = vrcp.pop %v440
        %v555 = vmul.f32 %v440, %v554
        %v556 = vsub.f32 1.0, %v555
        %v557 = vmul.f32 %v554, %v556
        %v558 = vadd.f32 %v554, %v557
        %vm559 = vweird.f32 %v440
        %vm560 = vweird.f32 %v554
        %vm561 = vmor %vm559, %vm560
        %v562 = vsel %vm561, %v554, %v558
        %v563 = vand.u32 2147483647, %v440
        %vm564 = vcmp.eq.f32.partialorder %v563, 8.507059e+37
        %v565 = vand.u32 %v440, 2147483648
        %v566 = vor.u32 1.1754944e-38, %v565
        %v567 = vsel %vm564, %v566, %v562
        %v568 = vmul.f32 2.0, %v567
        %v569 = vrcp.pop %v441
        %v570 = vmul.f32 %v441, %v569
        %v571 = vsub.f32 1.0, %v570
        %v572 = vmul.f32 %v569, %v571
        %v573 = vadd.f32 %v569, %v572
        %vm574 = vweird.f32 %v441
        %vm575 = vweird.f32 %v569
        %vm576 = vmor %vm574, %vm575
        %v577 = vsel %vm576, %v569, %v573
        %v578 = vand.u32 2147483647, %v441
        %vm579 = vcmp.eq.f32.partialorder %v578, 8.507059e+37
        %v580 = vand.u32 %v441, 2147483648
        %v581 = vor.u32 1.1754944e-38, %v580
        %v582 = vsel %vm579, %v581, %v577
        %v583 = vmul.f32 2.0, %v582
        %v584 = vrcp.pop %v442
        %v585 = vmul.f32 %v442, %v584
        %v586 = vsub.f32 1.0, %v585
        %v587 = vmul.f32 %v584, %v586
        %v588 = vadd.f32 %v584, %v587
        %vm589 = vweird.f32 %v442
        %vm590 = vweird.f32 %v584
        %vm591 = vmor %vm589, %vm590
        %v592 = vsel %vm591, %v584, %v588
        %v593 = vand.u32 2147483647, %v442
        %vm594 = vcmp.eq.f32.partialorder %v593, 8.507059e+37
        %v595 = vand.u32 %v442, 2147483648
        %v596 = vor.u32 1.1754944e-38, %v595
        %v597 = vsel %vm594, %v596, %v592
        %v598 = vmul.f32 2.0, %v597
        %v599 = vrcp.pop %v443
        %v600 = vmul.f32 %v443, %v599
        %v601 = vsub.f32 1.0, %v600
        %v602 = vmul.f32 %v599, %v601
        %v603 = vadd.f32 %v599, %v602
        %vm604 = vweird.f32 %v443
        %vm605 = vweird.f32 %v599
        %vm606 = vmor %vm604, %vm605
        %v607 = vsel %vm606, %v599, %v603
        %v608 = vand.u32 2147483647, %v443
        %vm609 = vcmp.eq.f32.partialorder %v608, 8.507059e+37
        %v610 = vand.u32 %v443, 2147483648
        %v611 = vor.u32 1.1754944e-38, %v610
        %v612 = vsel %vm609, %v611, %v607
        %v613 = vmul.f32 2.0, %v612
        %v614 = vrcp.pop %v444
        %v615 = vmul.f32 %v444, %v614
        %v616 = vsub.f32 1.0, %v615
        %v617 = vmul.f32 %v614, %v616
        %v618 = vadd.f32 %v614, %v617
        %vm619 = vweird.f32 %v444
        %vm620 = vweird.f32 %v614
        %vm621 = vmor %vm619, %vm620
        %v622 = vsel %vm621, %v614, %v618
        %v623 = vand.u32 2147483647, %v444
        %vm624 = vcmp.eq.f32.partialorder %v623, 8.507059e+37
        %v625 = vand.u32 %v444, 2147483648
        %v626 = vor.u32 1.1754944e-38, %v625
        %v627 = vsel %vm624, %v626, %v622
        %v628 = vmul.f32 2.0, %v627
        %v629 = vrcp.pop %v445
        %v630 = vmul.f32 %v445, %v629
        %v631 = vsub.f32 1.0, %v630
        %v632 = vmul.f32 %v629, %v631
        %v633 = vadd.f32 %v629, %v632
        %vm634 = vweird.f32 %v445
        %vm635 = vweird.f32 %v629
        %vm636 = vmor %vm634, %vm635
        %v637 = vsel %vm636, %v629, %v633
        %v638 = vand.u32 2147483647, %v445
        %vm639 = vcmp.eq.f32.partialorder %v638, 8.507059e+37
        %v640 = vand.u32 %v445, 2147483648
        %v641 = vor.u32 1.1754944e-38, %v640
        %v642 = vsel %vm639, %v641, %v637
        %v643 = vmul.f32 2.0, %v642
        %v644 = vrcp.pop %v446
        %v645 = vmul.f32 %v446, %v644
        %v646 = vsub.f32 1.0, %v645
        %v647 = vmul.f32 %v644, %v646
        %v648 = vadd.f32 %v644, %v647
        %vm649 = vweird.f32 %v446
        %vm650 = vweird.f32 %v644
        %vm651 = vmor %vm649, %vm650
        %v652 = vsel %vm651, %v644, %v648
        %v653 = vand.u32 2147483647, %v446
        %vm654 = vcmp.eq.f32.partialorder %v653, 8.507059e+37
        %v655 = vand.u32 %v446, 2147483648
        %v656 = vor.u32 1.1754944e-38, %v655
        %v657 = vsel %vm654, %v656, %v652
        %v658 = vmul.f32 2.0, %v657
        %v659 = vrcp.pop %v447
        %v660 = vmul.f32 %v447, %v659
        %v661 = vsub.f32 1.0, %v660
        %v662 = vmul.f32 %v659, %v661
        %v663 = vadd.f32 %v659, %v662
        %vm664 = vweird.f32 %v447
        %vm665 = vweird.f32 %v659
        %vm666 = vmor %vm664, %vm665
        %v667 = vsel %vm666, %v659, %v663
        %v668 = vand.u32 2147483647, %v447
        %vm669 = vcmp.eq.f32.partialorder %v668, 8.507059e+37
        %v670 = vand.u32 %v447, 2147483648
        %v671 = vor.u32 1.1754944e-38, %v670
        %v672 = vsel %vm669, %v671, %v667
        %v673 = vmul.f32 2.0, %v672
        %v674 = vrcp.pop %v448
        %v675 = vmul.f32 %v448, %v674
        %v676 = vsub.f32 1.0, %v675
        %v677 = vmul.f32 %v674, %v676
        %v678 = vadd.f32 %v674, %v677
        %vm679 = vweird.f32 %v448
        %vm680 = vweird.f32 %v674
        %vm681 = vmor %vm679, %vm680
        %v682 = vsel %vm681, %v674, %v678
        %v683 = vand.u32 2147483647, %v448
        %vm684 = vcmp.eq.f32.partialorder %v683, 8.507059e+37
        %v685 = vand.u32 %v448, 2147483648
        %v686 = vor.u32 1.1754944e-38, %v685
        %v687 = vsel %vm684, %v686, %v682
        %v688 = vmul.f32 2.0, %v687
        %v689 = vsub.f32 %v463, 1.0
        %v690 = vsub.f32 %v478, 1.0
        %v691 = vsub.f32 %v493, 1.0
        %v692 = vsub.f32 %v508, 1.0
        %v693 = vsub.f32 %v523, 1.0
        %v694 = vsub.f32 %v538, 1.0
        %v695 = vsub.f32 %v553, 1.0
        %v696 = vsub.f32 %v568, 1.0
        %v697 = vsub.f32 %v583, 1.0
        %v698 = vsub.f32 %v598, 1.0
        %v699 = vsub.f32 %v613, 1.0
        %v700 = vsub.f32 %v628, 1.0
        %v701 = vsub.f32 %v643, 1.0
        %v702 = vsub.f32 %v658, 1.0
        %v703 = vsub.f32 %v673, 1.0
        %v704 = vsub.f32 %v688, 1.0
        %v705 = vadd.f32 %v689, 1.0
        %v706 = vadd.f32 %v690, 1.0
        %v707 = vadd.f32 %v691, 1.0
        %v708 = vadd.f32 %v692, 1.0
        %v709 = vmul.f32 %v697, 0.5
        %v710 = vmul.f32 %v698, 0.5
        %v711 = vmul.f32 %v699, 0.5
        %v712 = vmul.f32 %v700, 0.5
        %v713 = vmul.f32 %v701, 0.5
        %v714 = vmul.f32 %v702, 0.5
        %v715 = vmul.f32 %v703, 0.5
        %v716 = vmul.f32 %v704, 0.5
        %718 = vset.pattern.permute.xlu0 0
        %719 = vperm.xlu0 %718, %v705
        %v720 = vpop.permute.xlu0 %719
        %723 = vset.pattern.permute.xlu0 0
        %724 = vperm.xlu0 %723, %v706
        %v725 = vpop.permute.xlu0 %724
        %728 = vset.pattern.permute.xlu0 0
        %729 = vperm.xlu0 %728, %v707
        %v730 = vpop.permute.xlu0 %729
        %733 = vset.pattern.permute.xlu0 0
        %734 = vperm.xlu0 %733, %v708
        %v735 = vpop.permute.xlu0 %734
        %v737 = vmul.f32 %v223, %v720
        %v738 = vmul.f32 %v224, %v720
        %v739 = vmul.f32 %v225, %v725
        %v740 = vmul.f32 %v226, %v725
        %v741 = vmul.f32 %v227, %v730
        %v742 = vmul.f32 %v228, %v730
        %v743 = vmul.f32 %v229, %v735
        %v744 = vmul.f32 %v230, %v735
        %746 = vset.pattern.permute.xlu0 0
        %747 = vperm.xlu0 %746, %v709
        %v748 = vpop.permute.xlu0 %747
        %751 = vset.pattern.permute.xlu0 0
        %752 = vperm.xlu0 %751, %v710
        %v753 = vpop.permute.xlu0 %752
        %756 = vset.pattern.permute.xlu0 0
        %757 = vperm.xlu0 %756, %v711
        %v758 = vpop.permute.xlu0 %757
        %761 = vset.pattern.permute.xlu0 0
        %762 = vperm.xlu0 %761, %v712
        %v763 = vpop.permute.xlu0 %762
        %v765 = vadd.f32 %v737, %v748
        %v766 = vadd.f32 %v738, %v748
        %v767 = vadd.f32 %v739, %v753
        %v768 = vadd.f32 %v740, %v753
        %v769 = vadd.f32 %v741, %v758
        %v770 = vadd.f32 %v742, %v758
        %v771 = vadd.f32 %v743, %v763
        %v772 = vadd.f32 %v744, %v763
        %774 = vset.pattern.permute.xlu0 0
        %775 = vperm.xlu0 %774, %v693
        %v776 = vpop.permute.xlu0 %775
        %779 = vset.pattern.permute.xlu0 0
        %780 = vperm.xlu0 %779, %v694
        %v781 = vpop.permute.xlu0 %780
        %784 = vset.pattern.permute.xlu0 0
        %785 = vperm.xlu0 %784, %v695
        %v786 = vpop.permute.xlu0 %785
        %789 = vset.pattern.permute.xlu0 0
        %790 = vperm.xlu0 %789, %v696
        %v791 = vpop.permute.xlu0 %790
        %v793 = vmul.f32 %v223, %v776
        %v794 = vmul.f32 %v224, %v776
        %v795 = vmul.f32 %v225, %v781
        %v796 = vmul.f32 %v226, %v781
        %v797 = vmul.f32 %v227, %v786
        %v798 = vmul.f32 %v228, %v786
        %v799 = vmul.f32 %v229, %v791
        %v800 = vmul.f32 %v230, %v791
        %802 = vset.pattern.permute.xlu0 0
        %803 = vperm.xlu0 %802, %v713
        %v804 = vpop.permute.xlu0 %803
        %807 = vset.pattern.permute.xlu0 0
        %808 = vperm.xlu0 %807, %v714
        %v809 = vpop.permute.xlu0 %808
        %812 = vset.pattern.permute.xlu0 0
        %813 = vperm.xlu0 %812, %v715
        %v814 = vpop.permute.xlu0 %813
        %817 = vset.pattern.permute.xlu0 0
        %818 = vperm.xlu0 %817, %v716
        %v819 = vpop.permute.xlu0 %818
        %v821 = vadd.f32 %v793, %v804
        %v822 = vadd.f32 %v794, %v804
        %v823 = vadd.f32 %v795, %v809
        %v824 = vadd.f32 %v796, %v809
        %v825 = vadd.f32 %v797, %v814
        %v826 = vadd.f32 %v798, %v814
        %v827 = vadd.f32 %v799, %v819
        %v828 = vadd.f32 %v800, %v819
        %v829 = vmax.f32 %v765, %v821
        %v830 = vmax.f32 %v766, %v822
        %v831 = vmax.f32 %v767, %v823
        %v832 = vmax.f32 %v768, %v824
        %v833 = vmax.f32 %v769, %v825
        %v834 = vmax.f32 %v770, %v826
        %v835 = vmax.f32 %v771, %v827
        %v836 = vmax.f32 %v772, %v828
        %837 = vst [vmem:[%s217] sm:$0xff] %v829
        %838 = vst [vmem:[%s217 + $0x8] sm:$0xff] %v830
        %839 = vst [vmem:[%s217 + $0x10] sm:$0xff] %v831
        %840 = vst [vmem:[%s217 + $0x18] sm:$0xff] %v832
        %841 = vst [vmem:[%s217 + $0x20] sm:$0xff] %v833
        %842 = vst [vmem:[%s217 + $0x28] sm:$0xff] %v834
        %843 = vst [vmem:[%s217 + $0x30] sm:$0xff] %v835
        %844 = vst [vmem:[%s217 + $0x38] sm:$0xff] %v836
        %s845 = sand.u32 %s137, 1
        %s846 = scalar_lea.sflag [#allocation3], %s845
        %s847 = sand.u32 %s137, 1
        %s848 = smul.addr %s847, 64
        %s849 = scalar_lea.vmem [#allocation2], %s848
        // Predicated region
        $region41: #{tpu_custom_call.1} parent=39 // pred_check
          %p850 = pneg %p147
        $region42: #{tpu_custom_call.1} parent=39 // pred_check_branch
          %852 = sbr.rel (%p850) target = $region44
        $region43: #{tpu_custom_call.1} parent=39 // pred_region
          %854 = vsyncadd %s846, 0
          %s855 = smul.addr %s19, 8
          %s856 = smul.addr %s855, 8
          %s857 = scalar_lea.hbm %s5, %s856
          %s858 = sshll.u32 %s849, 4
          %s859 = int_to_ptr.vmem [resolvable:$true] %s858
          %s860 = sshll.u32 %s857, 4
          %s861 = int_to_ptr.hbm [resolvable:$true] %s860
          %866 = dma.vmem_to_hbm [thread:$0]  %s859, 1024, %s861, %s846, 256, 256, 16
        $region44: #{tpu_custom_call.1} parent=39 // pred_fallthru
          _
      $region40: #{tpu_custom_call.1} parent=5 // pred_fallthru
        _
      %p867 = scmp.le.s32.totalorder 2, %s14
      // Predicated region
      $region45: #{tpu_custom_call.1} parent=5 // pred_check
        %p868 = pneg %p867
      $region46: #{tpu_custom_call.1} parent=5 // pred_check_branch
        %870 = sbr.rel (%p868) target = $region48
      $region47: #{tpu_custom_call.1} parent=5 // pred_region
        %s871 = ssub.s32 %s14, 2
        // Predicated region
        $region49: #{tpu_custom_call.1} parent=47 // pred_check
          %p872 = pneg %p153
        $region50: #{tpu_custom_call.1} parent=47 // pred_check_branch
          %874 = sbr.rel (%p872) target = $region52
        $region51: #{tpu_custom_call.1} parent=47 // pred_region
          %s875 = sand.u32 %s138, 1
          %s876 = scalar_lea.sflag [#allocation3], %s875
          %s877 = sand.u32 %s138, 1
          %s878 = smul.addr %s877, 64
          %s879 = scalar_lea.vmem [#allocation2], %s878
          %881 = dma.done %s876, 1024
        $region52: #{tpu_custom_call.1} parent=47 // pred_fallthru
          _
      $region48: #{tpu_custom_call.1} parent=5 // pred_fallthru
        _
    $region6: #{tpu_custom_call.1} parent=1 // loop_footer
      %s18 = sadd.s32 1, %s14
    $region7: #{tpu_custom_call.1} parent=1 // loop_footer_branch
      %13 = sbr.rel target = $region3
    $region8: #{tpu_custom_call.1} parent=1 // loop_exit
      _
    %882 = vsyncpa [#allocation3], 1
    %s883 = scalar_lea.sflag [#allocation3], 1
    %884 = vsyncpa %s883, 1

</llo_original>
